<compile_context>
chip_gen: v5e
topology: v5e:2x2
jax: 0.10.0
libtpu: 0.0.40
codegen_flags: <defaults>
</compile_context>

<pallas_src>
from typing import NamedTuple

import jax
import jax.numpy as jnp
from jax.experimental import pallas as pl
from jax.experimental.pallas import tpu as pltpu

_LANE = 128        # vreg lane width: hidden dim padded to a multiple of this
_ROW = 8           # sublane alignment for batch tiles
_MAX_TILE_B = 8192 # keep per-step work reasonable even with huge VMEM headroom


def _round_up(x: int, m: int) -> int:
    return (x + m - 1) // m * m


def _tpu_generation():
    """Return (is_v7x, vmem_capacity_bytes) with conservative fallbacks."""
    kind = ""
    try:
        kind = (jax.devices()[0].device_kind or "").lower()
    except Exception:
        pass
    is_v7x = "7" in kind
    try:
        cap = int(pltpu.get_tpu_info().vmem_capacity_bytes)
    except Exception:
        cap = (64 if is_v7x else 128) * 1024 * 1024
    return is_v7x, cap


class PreparedParams(NamedTuple):
    w1: jax.Array   # (n_feature, H)  MXU dtype, H = n_hidden rounded up to 128
    b1: jax.Array   # (1, H)          float32
    w2: jax.Array   # (H, H)          MXU dtype
    b2: jax.Array   # (1, H)          float32
    n_hidden: int   # logical (unpadded) hidden width


def prepare_params(w1, b1, w2, b2, *, mxu_dtype=jnp.bfloat16) -> PreparedParams:
    """One-time parameter prep (hoisted out of the per-call path).

    Zero-pads the hidden dim to a multiple of 128 lanes (padded activations are
    sigmoid(0)=0.5 but only ever multiply zero rows of the padded w2, and the
    padded output columns are never stored) and casts weights to the MXU dtype.
    Pass mxu_dtype=jnp.float32 if bit-closeness to a float32 PyTorch reference
    matters more than MXU throughput.
    """
    n_feature, n_hidden = w1.shape
    H = _round_up(n_hidden, _LANE)
    ph = H - n_hidden
    if ph:
        w1 = jnp.pad(w1, ((0, 0), (0, ph)))
        b1 = jnp.pad(b1, ((0, 0), (0, ph)))
        w2 = jnp.pad(w2, ((0, ph), (0, ph)))
        b2 = jnp.pad(b2, ((0, 0), (0, ph)))
    return PreparedParams(
        w1=w1.astype(mxu_dtype),
        b1=b1.astype(jnp.float32),
        w2=w2.astype(mxu_dtype),
        b2=b2.astype(jnp.float32),
        n_hidden=int(n_hidden),
    )


def _mlp_kernel(x_ref, w1_ref, b1_ref, w2_ref, b2_ref, o_ref):
    mxu_dtype = w1_ref.dtype
    # In-kernel cast to the MXU dtype: rides a free VPU slot, halves x-side HBM
    # traffic vs. a wrapper-side cast pass.
    x = x_ref[...].astype(mxu_dtype)                                   # (tb, F)
    h = jnp.dot(x, w1_ref[...], preferred_element_type=jnp.float32)    # MXU, f32 acc
    h = jax.nn.sigmoid(h + b1_ref[...])                                # f32 VPU/EUP (v5e-safe)
    h = h.astype(mxu_dtype)                                            # back into the MXU
    y = jnp.dot(h, w2_ref[...], preferred_element_type=jnp.float32)
    y = jax.nn.sigmoid(y + b2_ref[...])
    # Store only the logical n_hidden columns: masked narrow store when
    # n_hidden < 128, lane-dense when n_hidden % 128 == 0. Avoids emitting a
    # padded f32 slab plus a post-kernel XLA slice (two extra HBM passes).
    o_ref[...] = y[:, : o_ref.shape[-1]].astype(o_ref.dtype)


def net_forward(x, params: PreparedParams, *, tile_b=None):
    """Forward pass of `Net` (hidden1 -> sigmoid -> hidden2 -> sigmoid).

    x: (B, n_feature); params: output of prepare_params().
    Returns (B, n_hidden) in x.dtype.
    """
    B, n_feature = x.shape
    w1, b1, w2, b2, n_hidden = params
    H = w1.shape[1]
    out_dtype = x.dtype

    is_v7x, vmem_cap = _tpu_generation()
    x_bytes = jnp.dtype(x.dtype).itemsize
    out_bytes = jnp.dtype(out_dtype).itemsize
    mxu_bytes = jnp.dtype(w1.dtype).itemsize

    # VMEM-resident weights/biases (single-buffered via pl.Buffered(1)).
    weight_bytes = (n_feature * H + H * H) * mxu_bytes + 2 * H * 4
    # Per-row footprint: double-buffered x/out tiles + in-kernel intermediates
    # (x cast, h_f32, h cast, y_f32).
    per_row = (2 * n_feature * x_bytes
               + 2 * n_hidden * out_bytes
               + n_feature * mxu_bytes
               + H * (4 + mxu_bytes + 4))

    b_rows = _round_up(B, _ROW)
    if tile_b is None:
        budget = int(vmem_cap * 0.6)          # leave compiler/scratch headroom
        avail = budget - weight_bytes
        # TODO(synk): for very large n_hidden (H*H weights approaching the VMEM
        # budget, e.g. >=4K on v7x's 64 MiB), K-tile w2 via a reduction grid
        # axis / pltpu.emit_pipeline instead of holding it VMEM-resident.
        if avail > per_row * _ROW:
            cap_rows = (avail // per_row) // _ROW * _ROW
        else:
            cap_rows = _ROW
        tile_b = max(_ROW, min(_MAX_TILE_B, cap_rows, b_rows))
        # Only v7x has 2 TensorCores; splitting a single-tile batch on v5e/v6e
        # just adds a grid step with nothing to shard.
        if is_v7x and tile_b == b_rows and b_rows >= 2 * _ROW:
            tile_b = _round_up(pl.cdiv(b_rows, 2), _ROW)
    else:
        tile_b = max(_ROW, _round_up(min(int(tile_b), b_rows), _ROW))

    grid = (pl.cdiv(B, tile_b),)  # ragged last tile handled by Pallas masking

    def _limit(v):
        return int(min(max(32 * 1024 * 1024, v), (vmem_cap * 3) // 4))

    vmem_single = weight_bytes + tile_b * per_row + (4 << 20)

    def build(single_buffer_weights, vmem_limit):
        wkw = {"pipeline_mode": pl.Buffered(1)} if single_buffer_weights else {}
        return pl.pallas_call(
            _mlp_kernel,
            out_shape=jax.ShapeDtypeStruct((B, n_hidden), out_dtype),
            grid_spec=pltpu.PrefetchScalarGridSpec(
                num_scalar_prefetch=0,
                grid=grid,
                in_specs=[
                    pl.BlockSpec((tile_b, n_feature), lambda i: (i, 0)),
                    # Constant-index weights/biases: fetched once, VMEM-resident.
                    pl.BlockSpec((n_feature, H), lambda i: (0, 0), **wkw),
                    pl.BlockSpec((1, H), lambda i: (0, 0), **wkw),
                    pl.BlockSpec((H, H), lambda i: (0, 0), **wkw),
                    pl.BlockSpec((1, H), lambda i: (0, 0), **wkw),
                ],
                out_specs=pl.BlockSpec((tile_b, n_hidden), lambda i: (i, 0)),
            ),
            compiler_params=pltpu.CompilerParams(
                dimension_semantics=("parallel",),
                vmem_limit_bytes=vmem_limit,
            ),
        )

    try:
        return build(True, _limit(vmem_single))(x, w1, b1, w2, b2)
    except Exception:
        # Fallback if pipeline_mode=pl.Buffered(1) is unsupported by the
        # installed JAX: default double-buffered weights (budgeted twice).
        return build(False, _limit(vmem_single + weight_bytes))(x, w1, b1, w2, b2)


def init_params(key, n_feature, n_hidden, n_output, dtype=jnp.float32):
    """Deterministic init mimicking nn.Linear's U(-1/sqrt(fan_in), 1/sqrt(fan_in))."""
    ks = jax.random.split(key, 6)

    def linear(kw, kb, fan_in, fan_out):
        bound = 1.0 / jnp.sqrt(jnp.asarray(fan_in, dtype))
        w = jax.random.uniform(kw, (fan_in, fan_out), dtype, -bound, bound)
        b = jax.random.uniform(kb, (1, fan_out), dtype, -bound, bound)
        return w, b

    w1, b1 = linear(ks[0], ks[1], n_feature, n_hidden)
    w2, b2 = linear(ks[2], ks[3], n_hidden, n_hidden)
    # `predict` layer exists in the module but is unused by forward(); created for parity.
    wp, bp = linear(ks[4], ks[5], n_hidden, n_output)
    return (w1, b1, w2, b2, wp, bp)


if __name__ == "__main__":
    n_feature, n_hidden, n_output = 16, 32, 1
    batch = 8

    key = jax.random.PRNGKey(0)
    kx, kp = jax.random.split(key)
    x = jax.random.normal(kx, (batch, n_feature), dtype=jnp.float32)
    w1, b1, w2, b2, wp, bp = init_params(kp, n_feature, n_hidden, n_output)

    # One-time parameter prep (padding + MXU-dtype cast), hoisted out of the
    # per-call path.
    params = prepare_params(w1, b1, w2, b2)

    out = net_forward(x, params)
    out = jax.block_until_ready(out)

    # Pure-JAX reference using the same bf16 MXU operands / f32 accumulate /
    # f32 elementwise path as the kernel. (bf16 matmul intentionally diverges
    # slightly from a pure-f32 PyTorch reference; pass mxu_dtype=jnp.float32 to
    # prepare_params if bit-closeness matters.)
    def ref_forward(x, w1, b1, w2, b2, mdt=jnp.bfloat16):
        h = jnp.dot(x.astype(mdt), w1.astype(mdt),
                    preferred_element_type=jnp.float32) + b1
        h = jax.nn.sigmoid(h)
        y = jnp.dot(h.astype(mdt), w2.astype(mdt),
                    preferred_element_type=jnp.float32) + b2
        return jax.nn.sigmoid(y)

    expected = ref_forward(x, w1, b1, w2, b2)
    assert out.shape == (batch, n_hidden), out.shape
    max_err = float(jnp.max(jnp.abs(out - expected)))
    assert jnp.allclose(out, expected, atol=2e-3, rtol=2e-3), max_err

    print("KERNEL_OK")
</pallas_src>

<mosaic_0001>
module attributes {stable_mosaic.version = 11 : i64} {
  func.func @_mlp_kernel(%arg0: i32, %arg1: memref<8x16xf32, #tpu.memory_space<vmem>>, %arg2: memref<16x128xbf16, #tpu.memory_space<vmem>>, %arg3: memref<1x128xf32, #tpu.memory_space<vmem>>, %arg4: memref<128x128xbf16, #tpu.memory_space<vmem>>, %arg5: memref<1x128xf32, #tpu.memory_space<vmem>>, %arg6: memref<8x32xf32, #tpu.memory_space<vmem>>) attributes {dimension_semantics = [#tpu.dimension_semantics<parallel>], iteration_bounds = array<i64: 1>, scalar_prefetch = 0 : i64, scratch_operands = 0 : i64, tpu.core_type = #tpu.core_type<tc>, window_params = [{transform_indices = @transform_0, window_bounds = array<i64: 8, 16>}, {pipeline_mode = #tpu.pipeline_mode<synchronous>, transform_indices = @transform_1, window_bounds = array<i64: 16, 128>}, {pipeline_mode = #tpu.pipeline_mode<synchronous>, transform_indices = @transform_2, window_bounds = array<i64: 1, 128>}, {pipeline_mode = #tpu.pipeline_mode<synchronous>, transform_indices = @transform_3, window_bounds = array<i64: 128, 128>}, {pipeline_mode = #tpu.pipeline_mode<synchronous>, transform_indices = @transform_4, window_bounds = array<i64: 1, 128>}, {transform_indices = @transform_5, window_bounds = array<i64: 8, 32>}]} {
    %c0 = arith.constant 0 : index
    %c0_0 = arith.constant 0 : index
    %0 = vector.load %arg1[%c0, %c0_0] : memref<8x16xf32, #tpu.memory_space<vmem>>, vector<8x16xf32>
    %1 = arith.truncf %0 : vector<8x16xf32> to vector<8x16xbf16>
    %c0_1 = arith.constant 0 : index
    %c0_2 = arith.constant 0 : index
    %2 = vector.load %arg2[%c0_1, %c0_2] : memref<16x128xbf16, #tpu.memory_space<vmem>>, vector<16x128xbf16>
    %cst = arith.constant dense<0.000000e+00> : vector<8x128xf32>
    %3 = tpu.matmul %1, %2, %cst {dimension_numbers = #tpu.dot_dimension_numbers<[1], [0], [0], [1], [0, 0, 1, 1], [], []>} : vector<8x16xbf16>, vector<16x128xbf16>, vector<8x128xf32> -> vector<8x128xf32>
    %c0_3 = arith.constant 0 : index
    %c0_4 = arith.constant 0 : index
    %4 = vector.load %arg3[%c0_3, %c0_4] : memref<1x128xf32, #tpu.memory_space<vmem>>, vector<1x128xf32>
    %5 = vector.broadcast %4 : vector<1x128xf32> to vector<8x128xf32>
    %6 = arith.addf %3, %5 : vector<8x128xf32>
    %7 = arith.negf %6 : vector<8x128xf32>
    %8 = math.exp %7 : vector<8x128xf32>
    %cst_5 = arith.constant 1.000000e+00 : f32
    %9 = vector.broadcast %cst_5 : f32 to vector<8x128xf32>
    %10 = arith.addf %9, %8 : vector<8x128xf32>
    %11 = arith.divf %9, %10 : vector<8x128xf32>
    %12 = arith.truncf %11 : vector<8x128xf32> to vector<8x128xbf16>
    %c0_6 = arith.constant 0 : index
    %c0_7 = arith.constant 0 : index
    %13 = vector.load %arg4[%c0_6, %c0_7] : memref<128x128xbf16, #tpu.memory_space<vmem>>, vector<128x128xbf16>
    %cst_8 = arith.constant dense<0.000000e+00> : vector<8x128xf32>
    %14 = tpu.matmul %12, %13, %cst_8 {dimension_numbers = #tpu.dot_dimension_numbers<[1], [0], [0], [1], [0, 0, 1, 1], [], []>} : vector<8x128xbf16>, vector<128x128xbf16>, vector<8x128xf32> -> vector<8x128xf32>
    %c0_9 = arith.constant 0 : index
    %c0_10 = arith.constant 0 : index
    %15 = vector.load %arg5[%c0_9, %c0_10] : memref<1x128xf32, #tpu.memory_space<vmem>>, vector<1x128xf32>
    %16 = vector.broadcast %15 : vector<1x128xf32> to vector<8x128xf32>
    %17 = arith.addf %14, %16 : vector<8x128xf32>
    %18 = arith.negf %17 : vector<8x128xf32>
    %19 = math.exp %18 : vector<8x128xf32>
    %cst_11 = arith.constant 1.000000e+00 : f32
    %20 = vector.broadcast %cst_11 : f32 to vector<8x128xf32>
    %21 = arith.addf %20, %19 : vector<8x128xf32>
    %22 = arith.divf %20, %21 : vector<8x128xf32>
    %23 = vector.extract_strided_slice %22 {offsets = [0, 0], sizes = [8, 32], strides = [1, 1]} : vector<8x128xf32> to vector<8x32xf32>
    %c0_12 = arith.constant 0 : index
    %c0_13 = arith.constant 0 : index
    %24 = vector.load %arg6[%c0_12, %c0_13] : memref<8x32xf32, #tpu.memory_space<vmem>>, vector<8x32xf32>
    tpu.vector_store %arg6[%c0_12, %c0_13], %23 {strides = array<i32>} : memref<8x32xf32, #tpu.memory_space<vmem>>, vector<8x32xf32>,
    return
  }
  func.func @transform_0(%arg0: i32) -> (i32, i32) {
    %c0_i32 = arith.constant 0 : i32
    %c0_i32_0 = arith.constant 0 : i32
    return %arg0, %c0_i32 : i32, i32
  }
  func.func @transform_1(%arg0: i32) -> (i32, i32) {
    %c0_i32 = arith.constant 0 : i32
    %c0_i32_0 = arith.constant 0 : i32
    %c0_i32_1 = arith.constant 0 : i32
    return %c0_i32, %c0_i32_0 : i32, i32
  }
  func.func @transform_2(%arg0: i32) -> (i32, i32) {
    %c0_i32 = arith.constant 0 : i32
    %c0_i32_0 = arith.constant 0 : i32
    %c0_i32_1 = arith.constant 0 : i32
    return %c0_i32, %c0_i32_0 : i32, i32
  }
  func.func @transform_3(%arg0: i32) -> (i32, i32) {
    %c0_i32 = arith.constant 0 : i32
    %c0_i32_0 = arith.constant 0 : i32
    %c0_i32_1 = arith.constant 0 : i32
    return %c0_i32, %c0_i32_0 : i32, i32
  }
  func.func @transform_4(%arg0: i32) -> (i32, i32) {
    %c0_i32 = arith.constant 0 : i32
    %c0_i32_0 = arith.constant 0 : i32
    %c0_i32_1 = arith.constant 0 : i32
    return %c0_i32, %c0_i32_0 : i32, i32
  }
  func.func @transform_5(%arg0: i32) -> (i32, i32) {
    %c0_i32 = arith.constant 0 : i32
    %c0_i32_0 = arith.constant 0 : i32
    return %arg0, %c0_i32 : i32, i32
  }
}

module attributes {stable_mosaic.version = 11 : i64} {
  func.func @_mlp_kernel(%arg0: i32, %arg1: memref<8x16xf32, #tpu.memory_space<vmem>>, %arg2: memref<16x128xbf16, #tpu.memory_space<vmem>>, %arg3: memref<1x128xf32, #tpu.memory_space<vmem>>, %arg4: memref<128x128xbf16, #tpu.memory_space<vmem>>, %arg5: memref<1x128xf32, #tpu.memory_space<vmem>>, %arg6: memref<8x32xf32, #tpu.memory_space<vmem>>) attributes {dimension_semantics = [#tpu.dimension_semantics<parallel>], iteration_bounds = array<i64: 1>, scalar_prefetch = 0 : i64, scratch_operands = 0 : i64, tpu.core_type = #tpu.core_type<tc>, window_params = [{transform_indices = @transform_0, window_bounds = array<i64: 8, 16>}, {pipeline_mode = #tpu.pipeline_mode<synchronous>, transform_indices = @transform_1, window_bounds = array<i64: 16, 128>}, {pipeline_mode = #tpu.pipeline_mode<synchronous>, transform_indices = @transform_2, window_bounds = array<i64: 1, 128>}, {pipeline_mode = #tpu.pipeline_mode<synchronous>, transform_indices = @transform_3, window_bounds = array<i64: 128, 128>}, {pipeline_mode = #tpu.pipeline_mode<synchronous>, transform_indices = @transform_4, window_bounds = array<i64: 1, 128>}, {transform_indices = @transform_5, window_bounds = array<i64: 8, 32>}]} {
    %c0 = arith.constant 0 : index
    %c0_0 = arith.constant 0 : index
    %0 = vector.load %arg1[%c0, %c0_0] : memref<8x16xf32, #tpu.memory_space<vmem>>, vector<8x16xf32>
    %1 = arith.truncf %0 : vector<8x16xf32> to vector<8x16xbf16>
    %c0_1 = arith.constant 0 : index
    %c0_2 = arith.constant 0 : index
    %2 = vector.load %arg2[%c0_1, %c0_2] : memref<16x128xbf16, #tpu.memory_space<vmem>>, vector<16x128xbf16>
    %cst = arith.constant dense<0.000000e+00> : vector<8x128xf32>
    %3 = tpu.matmul %1, %2, %cst {dimension_numbers = #tpu.dot_dimension_numbers<[1], [0], [0], [1], [0, 0, 1, 1], [], []>} : vector<8x16xbf16>, vector<16x128xbf16>, vector<8x128xf32> -> vector<8x128xf32>
    %c0_3 = arith.constant 0 : index
    %c0_4 = arith.constant 0 : index
    %4 = vector.load %arg3[%c0_3, %c0_4] : memref<1x128xf32, #tpu.memory_space<vmem>>, vector<1x128xf32>
    %5 = vector.broadcast %4 : vector<1x128xf32> to vector<8x128xf32>
    %6 = arith.addf %3, %5 : vector<8x128xf32>
    %7 = arith.negf %6 : vector<8x128xf32>
    %8 = math.exp %7 : vector<8x128xf32>
    %cst_5 = arith.constant 1.000000e+00 : f32
    %9 = vector.broadcast %cst_5 : f32 to vector<8x128xf32>
    %10 = arith.addf %9, %8 : vector<8x128xf32>
    %11 = arith.divf %9, %10 : vector<8x128xf32>
    %12 = arith.truncf %11 : vector<8x128xf32> to vector<8x128xbf16>
    %c0_6 = arith.constant 0 : index
    %c0_7 = arith.constant 0 : index
    %13 = vector.load %arg4[%c0_6, %c0_7] : memref<128x128xbf16, #tpu.memory_space<vmem>>, vector<128x128xbf16>
    %cst_8 = arith.constant dense<0.000000e+00> : vector<8x128xf32>
    %14 = tpu.matmul %12, %13, %cst_8 {dimension_numbers = #tpu.dot_dimension_numbers<[1], [0], [0], [1], [0, 0, 1, 1], [], []>} : vector<8x128xbf16>, vector<128x128xbf16>, vector<8x128xf32> -> vector<8x128xf32>
    %c0_9 = arith.constant 0 : index
    %c0_10 = arith.constant 0 : index
    %15 = vector.load %arg5[%c0_9, %c0_10] : memref<1x128xf32, #tpu.memory_space<vmem>>, vector<1x128xf32>
    %16 = vector.broadcast %15 : vector<1x128xf32> to vector<8x128xf32>
    %17 = arith.addf %14, %16 : vector<8x128xf32>
    %18 = arith.negf %17 : vector<8x128xf32>
    %19 = math.exp %18 : vector<8x128xf32>
    %cst_11 = arith.constant 1.000000e+00 : f32
    %20 = vector.broadcast %cst_11 : f32 to vector<8x128xf32>
    %21 = arith.addf %20, %19 : vector<8x128xf32>
    %22 = arith.divf %20, %21 : vector<8x128xf32>
    %23 = vector.extract_strided_slice %22 {offsets = [0, 0], sizes = [8, 32], strides = [1, 1]} : vector<8x128xf32> to vector<8x32xf32>
    %c0_12 = arith.constant 0 : index
    %c0_13 = arith.constant 0 : index
    %24 = vector.load %arg6[%c0_12, %c0_13] : memref<8x32xf32, #tpu.memory_space<vmem>>, vector<8x32xf32>
    tpu.vector_store %arg6[%c0_12, %c0_13], %23 {strides = array<i32>} : memref<8x32xf32, #tpu.memory_space<vmem>>, vector<8x32xf32>,
    return
  }
  func.func @transform_0(%arg0: i32) -> (i32, i32) {
    %c0_i32 = arith.constant 0 : i32
    %c0_i32_0 = arith.constant 0 : i32
    return %arg0, %c0_i32 : i32, i32
  }
  func.func @transform_1(%arg0: i32) -> (i32, i32) {
    %c0_i32 = arith.constant 0 : i32
    %c0_i32_0 = arith.constant 0 : i32
    %c0_i32_1 = arith.constant 0 : i32
    return %c0_i32, %c0_i32_0 : i32, i32
  }
  func.func @transform_2(%arg0: i32) -> (i32, i32) {
    %c0_i32 = arith.constant 0 : i32
    %c0_i32_0 = arith.constant 0 : i32
    %c0_i32_1 = arith.constant 0 : i32
    return %c0_i32, %c0_i32_0 : i32, i32
  }
  func.func @transform_3(%arg0: i32) -> (i32, i32) {
    %c0_i32 = arith.constant 0 : i32
    %c0_i32_0 = arith.constant 0 : i32
    %c0_i32_1 = arith.constant 0 : i32
    return %c0_i32, %c0_i32_0 : i32, i32
  }
  func.func @transform_4(%arg0: i32) -> (i32, i32) {
    %c0_i32 = arith.constant 0 : i32
    %c0_i32_0 = arith.constant 0 : i32
    %c0_i32_1 = arith.constant 0 : i32
    return %c0_i32, %c0_i32_0 : i32, i32
  }
  func.func @transform_5(%arg0: i32) -> (i32, i32) {
    %c0_i32 = arith.constant 0 : i32
    %c0_i32_0 = arith.constant 0 : i32
    return %arg0, %c0_i32 : i32, i32
  }
}

</mosaic_0001>

<llo_original>
// kernel: tpu_custom_call.1
$region0: #{tpu_custom_call.1}
  #allocation0 [shape = 'u32[]', space=smem, size = 0x4, offset = 0x4, fixed_abs, tag = 'smem constant byte address 0x4 - core index']
  #allocation1 [shape = 'u32[72,128]{1,0:T(1,128)}', space=vmem, size = 0x9000, scoped, tag = 'internal scratch']
  %s0 = inlined_call_operand.hbm [shape: f32[8,16], index: 0, kind: input, shape index: {}]
  %s1 = inlined_call_operand.hbm [shape: bf16[16,128], index: 1, kind: input, shape index: {}]
  %s2 = inlined_call_operand.vmem [shape: f32[1,128], index: 2, kind: input, shape index: {}]
  %s3 = inlined_call_operand.hbm [shape: bf16[128,128], index: 3, kind: input, shape index: {}]
  %s4 = inlined_call_operand.vmem [shape: f32[1,128], index: 4, kind: input, shape index: {}]
  %s5 = inlined_call_operand.hbm [shape: f32[8,32], index: 5, kind: output, shape index: {}]
  %s6 = sld [smem:[#allocation0]]
  $region42: #{tpu_custom_call.1} parent=0
    _
  %s8 = ssub.s32 1, %s6
  %s9 = scalar_select 0, %s8, %s6
  $region1: #{tpu_custom_call.1} parent=0
    #allocation2 [shape = 'u8[4096]{0}', space=vmem, size = 0x1000, scoped, tag = 'input window, operand 0, single buffered']
    #allocation3 [shape = 's32[1]{0}', space=sflag, size = 0x4, scoped, tag = 'scoped memory for tpu_custom_call.1']
    #allocation4 [shape = 's32[1]{0}', space=sflag, size = 0x4, scoped, tag = 'scoped memory for tpu_custom_call.1']
    #allocation5 [shape = 'u8[4096]{0}', space=vmem, size = 0x1000, scoped, tag = 'input window, operand 1, single buffered']
    #allocation6 [shape = 's32[1]{0}', space=sflag, size = 0x4, scoped, tag = 'scoped memory for tpu_custom_call.1']
    #allocation7 [shape = 'u8[32768]{0}', space=vmem, size = 0x8000, scoped, tag = 'input window, operand 3, single buffered']
    #allocation8 [shape = 'u8[4096]{0}', space=vmem, size = 0x1000, scoped, tag = 'output window, operand 0, single buffered']
    %10 = vsyncpa [#allocation3], 0
    %11 = vsyncpa [#allocation6], 0
    %12 = vsyncpa [#allocation4], 0
    // Predicated region
    $region2: #{tpu_custom_call.1} parent=1 // pred_check
      _
    $region3: #{tpu_custom_call.1} parent=1 // pred_check_branch
      %14 = sbr.rel (0) target = $region5
    $region4: #{tpu_custom_call.1} parent=1 // pred_region
      %16 = vsyncadd [#allocation3], 0
      %s18 = sshll.u32 %s0, 4
      %s19 = int_to_ptr.hbm [resolvable:$true] %s18
      %s20 = sshll.u32 [#allocation2], 4
      %s21 = int_to_ptr.vmem [resolvable:$true] %s20
      %23 = dma.hbm_to_vmem [thread:$0]  %s19, 128, %s21, [#allocation3]
    $region5: #{tpu_custom_call.1} parent=1 // pred_fallthru
      _
    // Predicated region
    $region6: #{tpu_custom_call.1} parent=1 // pred_check
      _
    $region7: #{tpu_custom_call.1} parent=1 // pred_check_branch
      %25 = sbr.rel (0) target = $region9
    $region8: #{tpu_custom_call.1} parent=1 // pred_region
      %27 = vsyncadd [#allocation6], 0
      %s28 = sshll.u32 %s1, 4
      %s29 = int_to_ptr.hbm [resolvable:$true] %s28
      %s30 = sshll.u32 [#allocation5], 4
      %s31 = int_to_ptr.vmem [resolvable:$true] %s30
      %36 = dma.hbm_to_vmem [thread:$0]  %s29, 128, %s31, [#allocation6], 64, 64, 4
    $region9: #{tpu_custom_call.1} parent=1 // pred_fallthru
      _
    // Predicated region
    $region10: #{tpu_custom_call.1} parent=1 // pred_check
      _
    $region11: #{tpu_custom_call.1} parent=1 // pred_check_branch
      %38 = sbr.rel (0) target = $region13
    $region12: #{tpu_custom_call.1} parent=1 // pred_region
      _
    $region13: #{tpu_custom_call.1} parent=1 // pred_fallthru
      _
    // Predicated region
    $region14: #{tpu_custom_call.1} parent=1 // pred_check
      _
    $region15: #{tpu_custom_call.1} parent=1 // pred_check_branch
      %40 = sbr.rel (0) target = $region17
    $region16: #{tpu_custom_call.1} parent=1 // pred_region
      %42 = vsyncadd [#allocation6], 0
      %s43 = sshll.u32 %s3, 4
      %s44 = int_to_ptr.hbm [resolvable:$true] %s43
      %s45 = sshll.u32 [#allocation7], 4
      %s46 = int_to_ptr.vmem [resolvable:$true] %s45
      %51 = dma.hbm_to_vmem [thread:$0]  %s44, 1024, %s46, [#allocation6], 64, 64, 4
    $region17: #{tpu_custom_call.1} parent=1 // pred_fallthru
      _
    // Predicated region
    $region18: #{tpu_custom_call.1} parent=1 // pred_check
      _
    $region19: #{tpu_custom_call.1} parent=1 // pred_check_branch
      %53 = sbr.rel (0) target = $region21
    $region20: #{tpu_custom_call.1} parent=1 // pred_region
      _
    $region21: #{tpu_custom_call.1} parent=1 // pred_fallthru
      _
    // Predicated region
    $region22: #{tpu_custom_call.1} parent=1 // pred_check
      _
    $region23: #{tpu_custom_call.1} parent=1 // pred_check_branch
      %55 = sbr.rel (0) target = $region25
    $region24: #{tpu_custom_call.1} parent=1 // pred_region
      %57 = dma.done [#allocation3], 128
    $region25: #{tpu_custom_call.1} parent=1 // pred_fallthru
      _
    // Predicated region
    $region26: #{tpu_custom_call.1} parent=1 // pred_check
      _
    $region27: #{tpu_custom_call.1} parent=1 // pred_check_branch
      %59 = sbr.rel (0) target = $region29
    $region28: #{tpu_custom_call.1} parent=1 // pred_region
      %61 = dma.done [#allocation6], 128
    $region29: #{tpu_custom_call.1} parent=1 // pred_fallthru
      _
    // Predicated region
    $region30: #{tpu_custom_call.1} parent=1 // pred_check
      _
    $region31: #{tpu_custom_call.1} parent=1 // pred_check_branch
      %63 = sbr.rel (0) target = $region33
    $region32: #{tpu_custom_call.1} parent=1 // pred_region
      %65 = dma.done [#allocation6], 1024
    $region33: #{tpu_custom_call.1} parent=1 // pred_fallthru
      _
    %v67 = vld [vmem:[#allocation2] sm:$0xff]
    %v68 = vpack.c.bf16 %v67, %v67
    %v69 = vld [vmem:[#allocation5] sm:$0xf]
    %v70 = vld [vmem:[#allocation5 + $0x4] sm:$0xf]
    %v71 = vld [vmem:[%s2] sm:$0x1]
    %v73 = vperm.slane %v71, 0
    %v77 = vunpack.c.l.b16 %v69
    %v78 = vunpack.c.l.b16 %v70
    %v79 = vpack.c.b16 %v78, %v77
    %vm81 = vcmask 130048
    %v83 = vsel %vm81, %v68, 0
    %85 = vmatpush.bf16.msra.mxu0 0
    %86 = vmatpush.bf16.msra.mxu0 0
    %87 = vmatpush.bf16.msra.mxu0 0
    %88 = vmatpush.bf16.msra.mxu0 0
    %89 = vmatpush.bf16.msra.mxu0 0
    %90 = vmatpush.bf16.msra.mxu0 0
    %91 = vmatpush.bf16.msra.mxu0 0
    %92 = vmatpush.bf16.msra.mxu0 %v79
    %93 = vmatmul.bf16.gmra.mxu0 %v83
    %v94 = vpop.f32.mrf.mxu0
    %v95 = vadd.f32 %v73, %v94
    %v96 = vpop.f32.mrf.mxu0
    %97 = vdwg.mxu0
    %v98 = vxor.u32 %v95, 2147483648
    %v99 = vmul.f32 %v98, 1.442695
    %v100 = vpow.pop %v99
    %v101 = vadd.f32 %v100, 1.0
    %v102 = vrcp.pop %v101
    %v103 = vmul.f32 %v101, %v102
    %v104 = vsub.f32 1.0, %v103
    %v105 = vmul.f32 %v102, %v104
    %v106 = vadd.f32 %v102, %v105
    %vm107 = vweird.f32 %v101
    %vm108 = vweird.f32 %v102
    %vm109 = vmor %vm107, %vm108
    %v110 = vsel %vm109, %v102, %v106
    %v111 = vand.u32 2147483647, %v101
    %vm112 = vcmp.eq.f32.partialorder %v111, 8.507059e+37
    %v113 = vand.u32 %v101, 2147483648
    %v114 = vor.u32 1.1754944e-38, %v113
    %v115 = vsel %vm112, %v114, %v110
    %v116 = vmul.f32 1.0, %v115
    %v117 = vpack.c.bf16 %v116, %v116
    %v118 = vld [vmem:[#allocation7] sm:$0xf]
    %v119 = vld [vmem:[#allocation7 + $0x4] sm:$0xf]
    %v120 = vld [vmem:[#allocation7 + $0x8] sm:$0xf]
    %v121 = vld [vmem:[#allocation7 + $0xc] sm:$0xf]
    %v122 = vld [vmem:[#allocation7 + $0x10] sm:$0xf]
    %v123 = vld [vmem:[#allocation7 + $0x14] sm:$0xf]
    %v124 = vld [vmem:[#allocation7 + $0x18] sm:$0xf]
    %v125 = vld [vmem:[#allocation7 + $0x1c] sm:$0xf]
    %v126 = vld [vmem:[#allocation7 + $0x20] sm:$0xf]
    %v127 = vld [vmem:[#allocation7 + $0x24] sm:$0xf]
    %v128 = vld [vmem:[#allocation7 + $0x28] sm:$0xf]
    %v129 = vld [vmem:[#allocation7 + $0x2c] sm:$0xf]
    %v130 = vld [vmem:[#allocation7 + $0x30] sm:$0xf]
    %v131 = vld [vmem:[#allocation7 + $0x34] sm:$0xf]
    %v132 = vld [vmem:[#allocation7 + $0x38] sm:$0xf]
    %v133 = vld [vmem:[#allocation7 + $0x3c] sm:$0xf]
    %v134 = vld [vmem:[%s4] sm:$0x1]
    %v136 = vperm.slane %v134, 0
    %v154 = vunpack.c.l.b16 %v118
    %v155 = vunpack.c.l.b16 %v119
    %v156 = vunpack.c.l.b16 %v120
    %v157 = vunpack.c.l.b16 %v121
    %v158 = vunpack.c.l.b16 %v122
    %v159 = vunpack.c.l.b16 %v123
    %v160 = vunpack.c.l.b16 %v124
    %v161 = vunpack.c.l.b16 %v125
    %v162 = vunpack.c.l.b16 %v126
    %v163 = vunpack.c.l.b16 %v127
    %v164 = vunpack.c.l.b16 %v128
    %v165 = vunpack.c.l.b16 %v129
    %v166 = vunpack.c.l.b16 %v130
    %v167 = vunpack.c.l.b16 %v131
    %v168 = vunpack.c.l.b16 %v132
    %v169 = vunpack.c.l.b16 %v133
    %v170 = vpack.c.b16 %v155, %v154
    %v171 = vpack.c.b16 %v157, %v156
    %v172 = vpack.c.b16 %v159, %v158
    %v173 = vpack.c.b16 %v161, %v160
    %v174 = vpack.c.b16 %v163, %v162
    %v175 = vpack.c.b16 %v165, %v164
    %v176 = vpack.c.b16 %v167, %v166
    %v177 = vpack.c.b16 %v169, %v168
    %186 = vmatpush.bf16.msra.mxu0 %v177
    %187 = vmatpush.bf16.msra.mxu0 %v176
    %188 = vmatpush.bf16.msra.mxu0 %v175
    %189 = vmatpush.bf16.msra.mxu0 %v174
    %190 = vmatpush.bf16.msra.mxu0 %v173
    %191 = vmatpush.bf16.msra.mxu0 %v172
    %192 = vmatpush.bf16.msra.mxu0 %v171
    %193 = vmatpush.bf16.msra.mxu0 %v170
    %194 = vmatmul.bf16.gmra.mxu0 %v117
    %v195 = vpop.f32.mrf.mxu0
    %v196 = vadd.f32 %v136, %v195
    %v197 = vpop.f32.mrf.mxu0
    %198 = vdwg.mxu0
    %v199 = vxor.u32 %v196, 2147483648
    %v200 = vmul.f32 %v199, 1.442695
    %v201 = vpow.pop %v200
    %v202 = vadd.f32 %v201, 1.0
    %v203 = vrcp.pop %v202
    %v204 = vmul.f32 %v202, %v203
    %v205 = vsub.f32 1.0, %v204
    %v206 = vmul.f32 %v203, %v205
    %v207 = vadd.f32 %v203, %v206
    %vm208 = vweird.f32 %v202
    %vm209 = vweird.f32 %v203
    %vm210 = vmor %vm208, %vm209
    %v211 = vsel %vm210, %v203, %v207
    %v212 = vand.u32 2147483647, %v202
    %vm213 = vcmp.eq.f32.partialorder %v212, 8.507059e+37
    %v214 = vand.u32 %v202, 2147483648
    %v215 = vor.u32 1.1754944e-38, %v214
    %v216 = vsel %vm213, %v215, %v211
    %v217 = vmul.f32 1.0, %v216
    %vm218 = vcmask 261120
    %219 = vst.msk [vmem:[#allocation8] sm:$0xff] %vm218, %v217
    // Predicated region
    $region34: #{tpu_custom_call.1} parent=1 // pred_check
      _
    $region35: #{tpu_custom_call.1} parent=1 // pred_check_branch
      %221 = sbr.rel (0) target = $region37
    $region36: #{tpu_custom_call.1} parent=1 // pred_region
      %223 = vsyncadd [#allocation4], 0
      %s225 = sshll.u32 [#allocation8], 4
      %s226 = int_to_ptr.vmem [resolvable:$true] %s225
      %s227 = sshll.u32 %s5, 4
      %s228 = int_to_ptr.hbm [resolvable:$true] %s227
      %230 = dma.vmem_to_hbm [thread:$0]  %s226, 128, %s228, [#allocation4]
    $region37: #{tpu_custom_call.1} parent=1 // pred_fallthru
      _
    // Predicated region
    $region38: #{tpu_custom_call.1} parent=1 // pred_check
      _
    $region39: #{tpu_custom_call.1} parent=1 // pred_check_branch
      %232 = sbr.rel (0) target = $region41
    $region40: #{tpu_custom_call.1} parent=1 // pred_region
      %234 = dma.done [#allocation4], 128
    $region41: #{tpu_custom_call.1} parent=1 // pred_fallthru
      _
    %235 = vsyncpa [#allocation3], 1
    %236 = vsyncpa [#allocation6], 1
    %237 = vsyncpa [#allocation4], 1

// kernel: tpu_custom_call.1
$region0: #{tpu_custom_call.1}
  #allocation0 [shape = 'u32[]', space=smem, size = 0x4, offset = 0x4, fixed_abs, tag = 'smem constant byte address 0x4 - core index']
  #allocation1 [shape = 'u32[72,128]{1,0:T(1,128)}', space=vmem, size = 0x9000, scoped, tag = 'internal scratch']
  %s0 = inlined_call_operand.hbm [shape: f32[8,16], index: 0, kind: input, shape index: {}]
  %s1 = inlined_call_operand.hbm [shape: bf16[16,128], index: 1, kind: input, shape index: {}]
  %s2 = inlined_call_operand.vmem [shape: f32[1,128], index: 2, kind: input, shape index: {}]
  %s3 = inlined_call_operand.hbm [shape: bf16[128,128], index: 3, kind: input, shape index: {}]
  %s4 = inlined_call_operand.vmem [shape: f32[1,128], index: 4, kind: input, shape index: {}]
  %s5 = inlined_call_operand.hbm [shape: f32[8,32], index: 5, kind: output, shape index: {}]
  %s6 = sld [smem:[#allocation0]]
  $region42: #{tpu_custom_call.1} parent=0
    _
  %s8 = ssub.s32 1, %s6
  %s9 = scalar_select 0, %s8, %s6
  $region1: #{tpu_custom_call.1} parent=0
    #allocation2 [shape = 'u8[4096]{0}', space=vmem, size = 0x1000, scoped, tag = 'input window, operand 0, single buffered']
    #allocation3 [shape = 's32[1]{0}', space=sflag, size = 0x4, scoped, tag = 'scoped memory for tpu_custom_call.1']
    #allocation4 [shape = 's32[1]{0}', space=sflag, size = 0x4, scoped, tag = 'scoped memory for tpu_custom_call.1']
    #allocation5 [shape = 'u8[4096]{0}', space=vmem, size = 0x1000, scoped, tag = 'input window, operand 1, single buffered']
    #allocation6 [shape = 's32[1]{0}', space=sflag, size = 0x4, scoped, tag = 'scoped memory for tpu_custom_call.1']
    #allocation7 [shape = 'u8[32768]{0}', space=vmem, size = 0x8000, scoped, tag = 'input window, operand 3, single buffered']
    #allocation8 [shape = 'u8[4096]{0}', space=vmem, size = 0x1000, scoped, tag = 'output window, operand 0, single buffered']
    %10 = vsyncpa [#allocation3], 0
    %11 = vsyncpa [#allocation6], 0
    %12 = vsyncpa [#allocation4], 0
    // Predicated region
    $region2: #{tpu_custom_call.1} parent=1 // pred_check
      _
    $region3: #{tpu_custom_call.1} parent=1 // pred_check_branch
      %14 = sbr.rel (0) target = $region5
    $region4: #{tpu_custom_call.1} parent=1 // pred_region
      %16 = vsyncadd [#allocation3], 0
      %s18 = sshll.u32 %s0, 4
      %s19 = int_to_ptr.hbm [resolvable:$true] %s18
      %s20 = sshll.u32 [#allocation2], 4
      %s21 = int_to_ptr.vmem [resolvable:$true] %s20
      %23 = dma.hbm_to_vmem [thread:$0]  %s19, 128, %s21, [#allocation3]
    $region5: #{tpu_custom_call.1} parent=1 // pred_fallthru
      _
    // Predicated region
    $region6: #{tpu_custom_call.1} parent=1 // pred_check
      _
    $region7: #{tpu_custom_call.1} parent=1 // pred_check_branch
      %25 = sbr.rel (0) target = $region9
    $region8: #{tpu_custom_call.1} parent=1 // pred_region
      %27 = vsyncadd [#allocation6], 0
      %s28 = sshll.u32 %s1, 4
      %s29 = int_to_ptr.hbm [resolvable:$true] %s28
      %s30 = sshll.u32 [#allocation5], 4
      %s31 = int_to_ptr.vmem [resolvable:$true] %s30
      %36 = dma.hbm_to_vmem [thread:$0]  %s29, 128, %s31, [#allocation6], 64, 64, 4
    $region9: #{tpu_custom_call.1} parent=1 // pred_fallthru
      _
    // Predicated region
    $region10: #{tpu_custom_call.1} parent=1 // pred_check
      _
    $region11: #{tpu_custom_call.1} parent=1 // pred_check_branch
      %38 = sbr.rel (0) target = $region13
    $region12: #{tpu_custom_call.1} parent=1 // pred_region
      _
    $region13: #{tpu_custom_call.1} parent=1 // pred_fallthru
      _
    // Predicated region
    $region14: #{tpu_custom_call.1} parent=1 // pred_check
      _
    $region15: #{tpu_custom_call.1} parent=1 // pred_check_branch
      %40 = sbr.rel (0) target = $region17
    $region16: #{tpu_custom_call.1} parent=1 // pred_region
      %42 = vsyncadd [#allocation6], 0
      %s43 = sshll.u32 %s3, 4
      %s44 = int_to_ptr.hbm [resolvable:$true] %s43
      %s45 = sshll.u32 [#allocation7], 4
      %s46 = int_to_ptr.vmem [resolvable:$true] %s45
      %51 = dma.hbm_to_vmem [thread:$0]  %s44, 1024, %s46, [#allocation6], 64, 64, 4
    $region17: #{tpu_custom_call.1} parent=1 // pred_fallthru
      _
    // Predicated region
    $region18: #{tpu_custom_call.1} parent=1 // pred_check
      _
    $region19: #{tpu_custom_call.1} parent=1 // pred_check_branch
      %53 = sbr.rel (0) target = $region21
    $region20: #{tpu_custom_call.1} parent=1 // pred_region
      _
    $region21: #{tpu_custom_call.1} parent=1 // pred_fallthru
      _
    // Predicated region
    $region22: #{tpu_custom_call.1} parent=1 // pred_check
      _
    $region23: #{tpu_custom_call.1} parent=1 // pred_check_branch
      %55 = sbr.rel (0) target = $region25
    $region24: #{tpu_custom_call.1} parent=1 // pred_region
      %57 = dma.done [#allocation3], 128
    $region25: #{tpu_custom_call.1} parent=1 // pred_fallthru
      _
    // Predicated region
    $region26: #{tpu_custom_call.1} parent=1 // pred_check
      _
    $region27: #{tpu_custom_call.1} parent=1 // pred_check_branch
      %59 = sbr.rel (0) target = $region29
    $region28: #{tpu_custom_call.1} parent=1 // pred_region
      %61 = dma.done [#allocation6], 128
    $region29: #{tpu_custom_call.1} parent=1 // pred_fallthru
      _
    // Predicated region
    $region30: #{tpu_custom_call.1} parent=1 // pred_check
      _
    $region31: #{tpu_custom_call.1} parent=1 // pred_check_branch
      %63 = sbr.rel (0) target = $region33
    $region32: #{tpu_custom_call.1} parent=1 // pred_region
      %65 = dma.done [#allocation6], 1024
    $region33: #{tpu_custom_call.1} parent=1 // pred_fallthru
      _
    %v67 = vld [vmem:[#allocation2] sm:$0xff]
    %v68 = vpack.c.bf16 %v67, %v67
    %v69 = vld [vmem:[#allocation5] sm:$0xf]
    %v70 = vld [vmem:[#allocation5 + $0x4] sm:$0xf]
    %v71 = vld [vmem:[%s2] sm:$0x1]
    %v73 = vperm.slane %v71, 0
    %v77 = vunpack.c.l.b16 %v69
    %v78 = vunpack.c.l.b16 %v70
    %v79 = vpack.c.b16 %v78, %v77
    %vm81 = vcmask 130048
    %v83 = vsel %vm81, %v68, 0
    %85 = vmatpush.bf16.msra.mxu0 0
    %86 = vmatpush.bf16.msra.mxu0 0
    %87 = vmatpush.bf16.msra.mxu0 0
    %88 = vmatpush.bf16.msra.mxu0 0
    %89 = vmatpush.bf16.msra.mxu0 0
    %90 = vmatpush.bf16.msra.mxu0 0
    %91 = vmatpush.bf16.msra.mxu0 0
    %92 = vmatpush.bf16.msra.mxu0 %v79
    %93 = vmatmul.bf16.gmra.mxu0 %v83
    %v94 = vpop.f32.mrf.mxu0
    %v95 = vadd.f32 %v73, %v94
    %v96 = vpop.f32.mrf.mxu0
    %97 = vdwg.mxu0
    %v98 = vxor.u32 %v95, 2147483648
    %v99 = vmul.f32 %v98, 1.442695
    %v100 = vpow.pop %v99
    %v101 = vadd.f32 %v100, 1.0
    %v102 = vrcp.pop %v101
    %v103 = vmul.f32 %v101, %v102
    %v104 = vsub.f32 1.0, %v103
    %v105 = vmul.f32 %v102, %v104
    %v106 = vadd.f32 %v102, %v105
    %vm107 = vweird.f32 %v101
    %vm108 = vweird.f32 %v102
    %vm109 = vmor %vm107, %vm108
    %v110 = vsel %vm109, %v102, %v106
    %v111 = vand.u32 2147483647, %v101
    %vm112 = vcmp.eq.f32.partialorder %v111, 8.507059e+37
    %v113 = vand.u32 %v101, 2147483648
    %v114 = vor.u32 1.1754944e-38, %v113
    %v115 = vsel %vm112, %v114, %v110
    %v116 = vmul.f32 1.0, %v115
    %v117 = vpack.c.bf16 %v116, %v116
    %v118 = vld [vmem:[#allocation7] sm:$0xf]
    %v119 = vld [vmem:[#allocation7 + $0x4] sm:$0xf]
    %v120 = vld [vmem:[#allocation7 + $0x8] sm:$0xf]
    %v121 = vld [vmem:[#allocation7 + $0xc] sm:$0xf]
    %v122 = vld [vmem:[#allocation7 + $0x10] sm:$0xf]
    %v123 = vld [vmem:[#allocation7 + $0x14] sm:$0xf]
    %v124 = vld [vmem:[#allocation7 + $0x18] sm:$0xf]
    %v125 = vld [vmem:[#allocation7 + $0x1c] sm:$0xf]
    %v126 = vld [vmem:[#allocation7 + $0x20] sm:$0xf]
    %v127 = vld [vmem:[#allocation7 + $0x24] sm:$0xf]
    %v128 = vld [vmem:[#allocation7 + $0x28] sm:$0xf]
    %v129 = vld [vmem:[#allocation7 + $0x2c] sm:$0xf]
    %v130 = vld [vmem:[#allocation7 + $0x30] sm:$0xf]
    %v131 = vld [vmem:[#allocation7 + $0x34] sm:$0xf]
    %v132 = vld [vmem:[#allocation7 + $0x38] sm:$0xf]
    %v133 = vld [vmem:[#allocation7 + $0x3c] sm:$0xf]
    %v134 = vld [vmem:[%s4] sm:$0x1]
    %v136 = vperm.slane %v134, 0
    %v154 = vunpack.c.l.b16 %v118
    %v155 = vunpack.c.l.b16 %v119
    %v156 = vunpack.c.l.b16 %v120
    %v157 = vunpack.c.l.b16 %v121
    %v158 = vunpack.c.l.b16 %v122
    %v159 = vunpack.c.l.b16 %v123
    %v160 = vunpack.c.l.b16 %v124
    %v161 = vunpack.c.l.b16 %v125
    %v162 = vunpack.c.l.b16 %v126
    %v163 = vunpack.c.l.b16 %v127
    %v164 = vunpack.c.l.b16 %v128
    %v165 = vunpack.c.l.b16 %v129
    %v166 = vunpack.c.l.b16 %v130
    %v167 = vunpack.c.l.b16 %v131
    %v168 = vunpack.c.l.b16 %v132
    %v169 = vunpack.c.l.b16 %v133
    %v170 = vpack.c.b16 %v155, %v154
    %v171 = vpack.c.b16 %v157, %v156
    %v172 = vpack.c.b16 %v159, %v158
    %v173 = vpack.c.b16 %v161, %v160
    %v174 = vpack.c.b16 %v163, %v162
    %v175 = vpack.c.b16 %v165, %v164
    %v176 = vpack.c.b16 %v167, %v166
    %v177 = vpack.c.b16 %v169, %v168
    %186 = vmatpush.bf16.msra.mxu0 %v177
    %187 = vmatpush.bf16.msra.mxu0 %v176
    %188 = vmatpush.bf16.msra.mxu0 %v175
    %189 = vmatpush.bf16.msra.mxu0 %v174
    %190 = vmatpush.bf16.msra.mxu0 %v173
    %191 = vmatpush.bf16.msra.mxu0 %v172
    %192 = vmatpush.bf16.msra.mxu0 %v171
    %193 = vmatpush.bf16.msra.mxu0 %v170
    %194 = vmatmul.bf16.gmra.mxu0 %v117
    %v195 = vpop.f32.mrf.mxu0
    %v196 = vadd.f32 %v136, %v195
    %v197 = vpop.f32.mrf.mxu0
    %198 = vdwg.mxu0
    %v199 = vxor.u32 %v196, 2147483648
    %v200 = vmul.f32 %v199, 1.442695
    %v201 = vpow.pop %v200
    %v202 = vadd.f32 %v201, 1.0
    %v203 = vrcp.pop %v202
    %v204 = vmul.f32 %v202, %v203
    %v205 = vsub.f32 1.0, %v204
    %v206 = vmul.f32 %v203, %v205
    %v207 = vadd.f32 %v203, %v206
    %vm208 = vweird.f32 %v202
    %vm209 = vweird.f32 %v203
    %vm210 = vmor %vm208, %vm209
    %v211 = vsel %vm210, %v203, %v207
    %v212 = vand.u32 2147483647, %v202
    %vm213 = vcmp.eq.f32.partialorder %v212, 8.507059e+37
    %v214 = vand.u32 %v202, 2147483648
    %v215 = vor.u32 1.1754944e-38, %v214
    %v216 = vsel %vm213, %v215, %v211
    %v217 = vmul.f32 1.0, %v216
    %vm218 = vcmask 261120
    %219 = vst.msk [vmem:[#allocation8] sm:$0xff] %vm218, %v217
    // Predicated region
    $region34: #{tpu_custom_call.1} parent=1 // pred_check
      _
    $region35: #{tpu_custom_call.1} parent=1 // pred_check_branch
      %221 = sbr.rel (0) target = $region37
    $region36: #{tpu_custom_call.1} parent=1 // pred_region
      %223 = vsyncadd [#allocation4], 0
      %s225 = sshll.u32 [#allocation8], 4
      %s226 = int_to_ptr.vmem [resolvable:$true] %s225
      %s227 = sshll.u32 %s5, 4
      %s228 = int_to_ptr.hbm [resolvable:$true] %s227
      %230 = dma.vmem_to_hbm [thread:$0]  %s226, 128, %s228, [#allocation4]
    $region37: #{tpu_custom_call.1} parent=1 // pred_fallthru
      _
    // Predicated region
    $region38: #{tpu_custom_call.1} parent=1 // pred_check
      _
    $region39: #{tpu_custom_call.1} parent=1 // pred_check_branch
      %232 = sbr.rel (0) target = $region41
    $region40: #{tpu_custom_call.1} parent=1 // pred_region
      %234 = dma.done [#allocation4], 128
    $region41: #{tpu_custom_call.1} parent=1 // pred_fallthru
      _
    %235 = vsyncpa [#allocation3], 1
    %236 = vsyncpa [#allocation6], 1
    %237 = vsyncpa [#allocation4], 1

</llo_original>
